<compile_context>
chip_gen: v5e
topology: v5e:2x2
jax: 0.10.0
libtpu: 0.0.40
codegen_flags: <defaults>
</compile_context>

<pallas_src>
import jax
import jax.numpy as jnp
from jax.experimental import pallas as pl
from jax.experimental.pallas import tpu as pltpu


def _round_up(x, m):
    return (x + m - 1) // m * m


def _fused_gemm_bn_relu_kernel(p_ref, w_ref, scale_ref, shift_ref, o_ref):
    """One (TILE_M, TILE_CO) output tile per grid step.

    p_ref:     (TILE_M, K)       im2col patches (native dtype)
    w_ref:     (K, TILE_CO)      packed conv weights (native dtype)
    scale_ref: (1, TILE_CO)      folded BN scale  gamma / sqrt(var+eps)   (f32)
    shift_ref: (1, TILE_CO)      folded BN shift  beta - mean*scale       (f32)
    o_ref:     (TILE_M, TILE_CO) output tile (lane-dense, 128-aligned)
    """
    # Single MXU matmul; f32 accumulation via preferred_element_type.
    acc = jnp.dot(p_ref[...], w_ref[...], preferred_element_type=jnp.float32)
    # Fused eval-mode BN + ReLU epilogue.
    y = acc * scale_ref[...] + shift_ref[...]
    o_ref[...] = jnp.maximum(y, 0.0).astype(o_ref.dtype)


def basic_conv(x_nchw, weight_oihw, gamma, beta, running_mean, running_var,
               *, stride=1, padding=0, dilation=1, groups=1, eps=1e-5):
    """BasicConv forward: conv2d (no bias) -> BatchNorm2d (eval) -> ReLU.

    x_nchw:      (N, Cin, H, W)
    weight_oihw: (Cout, Cin, KH, KW)   (PyTorch layout)
    returns      (N, Cout, H_out, W_out)
    """
    assert stride == 1 and dilation == 1 and groups == 1, (
        "only the BasicConv defaults (stride=1, dilation=1, groups=1) are "
        "implemented")

    N, Cin, H, W = x_nchw.shape
    Cout, _, KH, KW = weight_oihw.shape

    # NCHW -> NHWC and spatial pad.
    x_nhwc = jnp.transpose(x_nchw, (0, 2, 3, 1))
    x_pad = jnp.pad(
        x_nhwc, ((0, 0), (padding, padding), (padding, padding), (0, 0)))
    Hp, Wp = x_pad.shape[1], x_pad.shape[2]
    H_out = Hp - KH + 1
    W_out = Wp - KW + 1

    # im2col once in the wrapper: feature order (kh, kw, cin) so it matches the
    # HWIO-reshaped weight packing below.
    taps = [x_pad[:, kh:kh + H_out, kw:kw + W_out, :]
            for kh in range(KH) for kw in range(KW)]
    patches = jnp.concatenate(taps, axis=-1)          # (N, H_out, W_out, K)
    K = KH * KW * Cin
    M = N * H_out * W_out
    patches = patches.reshape(M, K)

    # Pre-pack weights densely: OIHW -> HWIO -> (K, Cout), order (kh, kw, cin).
    w_packed = jnp.transpose(weight_oihw, (2, 3, 1, 0)).reshape(K, Cout)

    # Fold eval-mode BN into per-channel scale / shift (f32).
    scale = (gamma.astype(jnp.float32) /
             jnp.sqrt(running_var.astype(jnp.float32) + eps))
    shift = beta.astype(jnp.float32) - running_mean.astype(jnp.float32) * scale

    # Lane-dense, 128-aligned tiling.
    TILE_CO = 128
    tile_m = min(256, _round_up(M, 128))
    M_pad = _round_up(M, tile_m)
    Cout_pad = _round_up(Cout, TILE_CO)

    patches = jnp.pad(patches, ((0, M_pad - M), (0, 0)))
    w_packed = jnp.pad(w_packed, ((0, 0), (0, Cout_pad - Cout)))
    scale = jnp.pad(scale, (0, Cout_pad - Cout)).reshape(1, Cout_pad)
    shift = jnp.pad(shift, (0, Cout_pad - Cout)).reshape(1, Cout_pad)

    grid = (M_pad // tile_m, Cout_pad // TILE_CO)

    out = pl.pallas_call(
        _fused_gemm_bn_relu_kernel,
        out_shape=jax.ShapeDtypeStruct((M_pad, Cout_pad), x_nchw.dtype),
        grid_spec=pltpu.PrefetchScalarGridSpec(
            num_scalar_prefetch=0,
            grid=grid,
            in_specs=[
                # K is small and kept fully resident (no K grid axis); blocks
                # with last dim == full K are legal and DMA contiguously.
                pl.BlockSpec((tile_m, K), lambda m, co: (m, 0)),
                pl.BlockSpec((K, TILE_CO), lambda m, co: (0, co)),
                pl.BlockSpec((1, TILE_CO), lambda m, co: (0, co)),
                pl.BlockSpec((1, TILE_CO), lambda m, co: (0, co)),
            ],
            out_specs=pl.BlockSpec((tile_m, TILE_CO), lambda m, co: (m, co)),
        ),
        compiler_params=pltpu.CompilerParams(
            dimension_semantics=("parallel", "parallel"),
            vmem_limit_bytes=32 * 1024 * 1024,   # safe on v5e/v6e/v7x
        ),
    )(patches, w_packed, scale, shift)

    # (M_pad, Cout_pad) -> (N, Cout, H_out, W_out)
    out = out[:M, :Cout].reshape(N, H_out, W_out, Cout)
    return jnp.transpose(out, (0, 3, 1, 2))


def _reference(x_nchw, weight_oihw, gamma, beta, running_mean, running_var,
               *, padding, eps=1e-5):
    """Plain-JAX reference (conv -> eval BN -> ReLU)."""
    y = jax.lax.conv_general_dilated(
        x_nchw.astype(jnp.float32), weight_oihw.astype(jnp.float32),
        window_strides=(1, 1),
        padding=((padding, padding), (padding, padding)),
        dimension_numbers=("NCHW", "OIHW", "NCHW"))
    scale = gamma / jnp.sqrt(running_var + eps)
    shift = beta - running_mean * scale
    y = y * scale[None, :, None, None] + shift[None, :, None, None]
    return jnp.maximum(y, 0.0)


if __name__ == "__main__":
    # BasicConv(in_planes=4, out_planes=8, kernel_size=3, padding=1)
    N, Cin, H, W = 2, 4, 16, 16
    Cout, KH, KW = 8, 3, 3
    padding = 1

    key = jax.random.PRNGKey(0)
    kx, kw, kg, kb, km, kv = jax.random.split(key, 6)

    x = jax.random.normal(kx, (N, Cin, H, W), dtype=jnp.float32)
    weight = jax.random.normal(kw, (Cout, Cin, KH, KW), dtype=jnp.float32) * 0.1
    gamma = 1.0 + 0.1 * jax.random.normal(kg, (Cout,), dtype=jnp.float32)
    beta = 0.1 * jax.random.normal(kb, (Cout,), dtype=jnp.float32)
    running_mean = 0.1 * jax.random.normal(km, (Cout,), dtype=jnp.float32)
    running_var = 1.0 + 0.1 * jax.random.uniform(kv, (Cout,), dtype=jnp.float32)

    out = basic_conv(x, weight, gamma, beta, running_mean, running_var,
                     padding=padding)
    out = jax.block_until_ready(out)

    ref = _reference(x, weight, gamma, beta, running_mean, running_var,
                     padding=padding)
    assert out.shape == (N, Cout, H, W), out.shape
    assert jnp.allclose(out, ref, atol=1e-4, rtol=1e-4), \
        float(jnp.max(jnp.abs(out - ref)))

    print("KERNEL_OK")
</pallas_src>

<mosaic_0001>
module attributes {stable_mosaic.version = 11 : i64} {
  func.func @_fused_gemm_bn_relu_kernel(%arg0: i32, %arg1: i32, %arg2: memref<256x36xf32, #tpu.memory_space<vmem>>, %arg3: memref<36x128xf32, #tpu.memory_space<vmem>>, %arg4: memref<1x128xf32, #tpu.memory_space<vmem>>, %arg5: memref<1x128xf32, #tpu.memory_space<vmem>>, %arg6: memref<256x128xf32, #tpu.memory_space<vmem>>) attributes {dimension_semantics = [#tpu.dimension_semantics<parallel>, #tpu.dimension_semantics<parallel>], iteration_bounds = array<i64: 2, 1>, scalar_prefetch = 0 : i64, scratch_operands = 0 : i64, tpu.core_type = #tpu.core_type<tc>, window_params = [{transform_indices = @transform_0, window_bounds = array<i64: 256, 36>}, {transform_indices = @transform_1, window_bounds = array<i64: 36, 128>}, {transform_indices = @transform_2, window_bounds = array<i64: 1, 128>}, {transform_indices = @transform_3, window_bounds = array<i64: 1, 128>}, {transform_indices = @transform_4, window_bounds = array<i64: 256, 128>}]} {
    %c0 = arith.constant 0 : index
    %c0_0 = arith.constant 0 : index
    %0 = vector.load %arg2[%c0, %c0_0] : memref<256x36xf32, #tpu.memory_space<vmem>>, vector<256x36xf32>
    %c0_1 = arith.constant 0 : index
    %c0_2 = arith.constant 0 : index
    %1 = vector.load %arg3[%c0_1, %c0_2] : memref<36x128xf32, #tpu.memory_space<vmem>>, vector<36x128xf32>
    %cst = arith.constant dense<0.000000e+00> : vector<256x128xf32>
    %2 = tpu.matmul %0, %1, %cst {dimension_numbers = #tpu.dot_dimension_numbers<[1], [0], [0], [1], [0, 0, 1, 1], [], []>} : vector<256x36xf32>, vector<36x128xf32>, vector<256x128xf32> -> vector<256x128xf32>
    %c0_3 = arith.constant 0 : index
    %c0_4 = arith.constant 0 : index
    %3 = vector.load %arg4[%c0_3, %c0_4] : memref<1x128xf32, #tpu.memory_space<vmem>>, vector<1x128xf32>
    %4 = vector.broadcast %3 : vector<1x128xf32> to vector<256x128xf32>
    %5 = arith.mulf %2, %4 : vector<256x128xf32>
    %c0_5 = arith.constant 0 : index
    %c0_6 = arith.constant 0 : index
    %6 = vector.load %arg5[%c0_5, %c0_6] : memref<1x128xf32, #tpu.memory_space<vmem>>, vector<1x128xf32>
    %7 = vector.broadcast %6 : vector<1x128xf32> to vector<256x128xf32>
    %8 = arith.addf %5, %7 : vector<256x128xf32>
    %cst_7 = arith.constant 0.000000e+00 : f32
    %9 = vector.broadcast %cst_7 : f32 to vector<256x128xf32>
    %10 = arith.maximumf %8, %9 : vector<256x128xf32>
    %c0_8 = arith.constant 0 : index
    %c0_9 = arith.constant 0 : index
    %11 = vector.load %arg6[%c0_8, %c0_9] : memref<256x128xf32, #tpu.memory_space<vmem>>, vector<256x128xf32>
    tpu.vector_store %arg6[%c0_8, %c0_9], %10 {strides = array<i32>} : memref<256x128xf32, #tpu.memory_space<vmem>>, vector<256x128xf32>,
    return
  }
  func.func @transform_0(%arg0: i32, %arg1: i32) -> (i32, i32) {
    %c0_i32 = arith.constant 0 : i32
    %c0_i32_0 = arith.constant 0 : i32
    return %arg0, %c0_i32 : i32, i32
  }
  func.func @transform_1(%arg0: i32, %arg1: i32) -> (i32, i32) {
    %c0_i32 = arith.constant 0 : i32
    %c0_i32_0 = arith.constant 0 : i32
    return %c0_i32, %arg1 : i32, i32
  }
  func.func @transform_2(%arg0: i32, %arg1: i32) -> (i32, i32) {
    %c0_i32 = arith.constant 0 : i32
    %c0_i32_0 = arith.constant 0 : i32
    return %c0_i32, %arg1 : i32, i32
  }
  func.func @transform_3(%arg0: i32, %arg1: i32) -> (i32, i32) {
    %c0_i32 = arith.constant 0 : i32
    %c0_i32_0 = arith.constant 0 : i32
    return %c0_i32, %arg1 : i32, i32
  }
  func.func @transform_4(%arg0: i32, %arg1: i32) -> (i32, i32) {
    %c0_i32 = arith.constant 0 : i32
    return %arg0, %arg1 : i32, i32
  }
}

</mosaic_0001>

<llo_original>
// kernel: tpu_custom_call.1
$region0: #{tpu_custom_call.1}
  #allocation0 [shape = 'u32[]', space=smem, size = 0x4, offset = 0x4, fixed_abs, tag = 'smem constant byte address 0x4 - core index']
  #allocation1 [shape = 'u32[72,128]{1,0:T(1,128)}', space=vmem, size = 0x9000, scoped, tag = 'internal scratch']
  %s0 = inlined_call_operand.vmem [shape: f32[512,36], index: 0, kind: input, shape index: {}]
  %s1 = inlined_call_operand.vmem [shape: f32[36,128], index: 1, kind: input, shape index: {}]
  %s2 = inlined_call_operand.vmem [shape: f32[1,128], index: 2, kind: input, shape index: {}]
  %s3 = inlined_call_operand.vmem [shape: f32[1,128], index: 3, kind: input, shape index: {}]
  %s4 = inlined_call_operand.hbm [shape: f32[512,128], index: 4, kind: output, shape index: {}]
  %s5 = sld [smem:[#allocation0]]
  $region49: #{tpu_custom_call.1} parent=0
    _
  %s7 = ssub.s32 1, %s5
  %s8 = scalar_select 0, %s7, %s5
  $region1: #{tpu_custom_call.1} parent=0
    #allocation2 [shape = 'u8[262144]{0}', space=vmem, size = 0x40000, scoped, tag = 'output window, operand 0']
    #allocation3 [shape = 's32[2]{0}', space=sflag, size = 0x8, scoped, tag = 'scoped memory for tpu_custom_call.1']
    %9 = vsyncpa [#allocation3], 0
    %s10 = scalar_lea.sflag [#allocation3], 1
    %11 = vsyncpa %s10, 0
    loop: start=0, step=1, limit=4
    $region2: #{tpu_custom_call.1} parent=1 // loop_pre_header
      _
    $region3: #{tpu_custom_call.1} parent=1 // loop_header
      %s13 = sphi 0, %s17
      %p14 = scmp.ge.s32.totalorder %s13, 4
      %s20 = sphi 0, %s32
      %s21 = sphi 0, %s28
      %s22 = sphi 0, %s20
      %s23 = sphi 0, %s21
      %s24 = sphi 0, %s22
      %s25 = sphi 0, %s23
      %s35 = sphi 0, %s37
      %s38 = sphi 0, %s35
      %s39 = sphi 0, %s38
      %s55 = sphi 0, %s39
      %s61 = sphi 0, %s63
      %s64 = sphi 0, %s61
      %s65 = sphi 0, %s64
      %s81 = sphi 0, %s65
      %s87 = sphi 0, %s89
      %s90 = sphi 0, %s87
      %s91 = sphi 0, %s90
      %s107 = sphi 0, %s91
      %s113 = sphi 0, %s115
      %s116 = sphi 0, %s113
      %s117 = sphi 0, %s116
      %s133 = sphi 0, %s117
      %s141 = sphi 0, %s143
      %s144 = sphi 0, %s141
      %s145 = sphi 0, %s144
      %s161 = sphi 0, %s145
    $region4: #{tpu_custom_call.1} parent=1 // loop_header_branch
      %16 = sbr.rel (%p14) target = $region8
    $region5: #{tpu_custom_call.1} parent=1 // loop_body
      %s18 = ssub.s32 %s13, 1
      %s19 = ssub.s32 %s13, 2
      %s26 = sadd.s32 1, %s21
      %p27 = scmp.ge.s32.totalorder %s26, 1
      %s28 = scalar_select %p27, 0, %s26
      %s29 = sadd.s32 1, %s20
      %s30 = scalar_select %p27, %s29, %s20
      %p31 = scmp.ge.s32.totalorder %s30, 2
      %s32 = scalar_select %p31, 0, %s30
      %s33 = ssub.s32 %s20, %s32
      %p34 = scmp.eq.s32.totalorder %s33, 0
      %s36 = sadd.s32 %s35, 1
      %s37 = scalar_select %p34, %s35, %s36
      %p40 = pneg %p34
      %p41 = scmp.eq.s32.totalorder %s13, 1
      %p42 = por %p40, %p41
      %p43 = scmp.ne.s32.totalorder %s35, %s38
      %p44 = scmp.eq.s32.totalorder %s13, 0
      %p45 = por %p43, %p44
      %p46 = scmp.ne.s32.totalorder %s35, %s38
      %p47 = scmp.eq.s32.totalorder %s18, 1
      %p48 = por %p46, %p47
      %p49 = scmp.ne.s32.totalorder %s38, %s39
      %p50 = scmp.eq.s32.totalorder %s18, 0
      %p51 = por %p49, %p50
      %p52 = scmp.ne.s32.totalorder %s38, %s39
      %p53 = scmp.eq.s32.totalorder %s19, 1
      %p54 = por %p52, %p53
      %p56 = scmp.ne.s32.totalorder %s39, %s55
      %p57 = scmp.eq.s32.totalorder %s19, 0
      %p58 = por %p56, %p57
      %s59 = ssub.s32 %s21, %s28
      %p60 = scmp.eq.s32.totalorder %s59, 0
      %s62 = sadd.s32 %s61, 1
      %s63 = scalar_select %p60, %s61, %s62
      %p66 = pneg %p60
      %p67 = scmp.eq.s32.totalorder %s13, 1
      %p68 = por %p66, %p67
      %p69 = scmp.ne.s32.totalorder %s61, %s64
      %p70 = scmp.eq.s32.totalorder %s13, 0
      %p71 = por %p69, %p70
      %p72 = scmp.ne.s32.totalorder %s61, %s64
      %p73 = scmp.eq.s32.totalorder %s18, 1
      %p74 = por %p72, %p73
      %p75 = scmp.ne.s32.totalorder %s64, %s65
      %p76 = scmp.eq.s32.totalorder %s18, 0
      %p77 = por %p75, %p76
      %p78 = scmp.ne.s32.totalorder %s64, %s65
      %p79 = scmp.eq.s32.totalorder %s19, 1
      %p80 = por %p78, %p79
      %p82 = scmp.ne.s32.totalorder %s65, %s81
      %p83 = scmp.eq.s32.totalorder %s19, 0
      %p84 = por %p82, %p83
      %s85 = ssub.s32 %s21, %s28
      %p86 = scmp.eq.s32.totalorder %s85, 0
      %s88 = sadd.s32 %s87, 1
      %s89 = scalar_select %p86, %s87, %s88
      %p92 = pneg %p86
      %p93 = scmp.eq.s32.totalorder %s13, 1
      %p94 = por %p92, %p93
      %p95 = scmp.ne.s32.totalorder %s87, %s90
      %p96 = scmp.eq.s32.totalorder %s13, 0
      %p97 = por %p95, %p96
      %p98 = scmp.ne.s32.totalorder %s87, %s90
      %p99 = scmp.eq.s32.totalorder %s18, 1
      %p100 = por %p98, %p99
      %p101 = scmp.ne.s32.totalorder %s90, %s91
      %p102 = scmp.eq.s32.totalorder %s18, 0
      %p103 = por %p101, %p102
      %p104 = scmp.ne.s32.totalorder %s90, %s91
      %p105 = scmp.eq.s32.totalorder %s19, 1
      %p106 = por %p104, %p105
      %p108 = scmp.ne.s32.totalorder %s91, %s107
      %p109 = scmp.eq.s32.totalorder %s19, 0
      %p110 = por %p108, %p109
      %s111 = ssub.s32 %s21, %s28
      %p112 = scmp.eq.s32.totalorder %s111, 0
      %s114 = sadd.s32 %s113, 1
      %s115 = scalar_select %p112, %s113, %s114
      %p118 = pneg %p112
      %p119 = scmp.eq.s32.totalorder %s13, 1
      %p120 = por %p118, %p119
      %p121 = scmp.ne.s32.totalorder %s113, %s116
      %p122 = scmp.eq.s32.totalorder %s13, 0
      %p123 = por %p121, %p122
      %p124 = scmp.ne.s32.totalorder %s113, %s116
      %p125 = scmp.eq.s32.totalorder %s18, 1
      %p126 = por %p124, %p125
      %p127 = scmp.ne.s32.totalorder %s116, %s117
      %p128 = scmp.eq.s32.totalorder %s18, 0
      %p129 = por %p127, %p128
      %p130 = scmp.ne.s32.totalorder %s116, %s117
      %p131 = scmp.eq.s32.totalorder %s19, 1
      %p132 = por %p130, %p131
      %p134 = scmp.ne.s32.totalorder %s117, %s133
      %p135 = scmp.eq.s32.totalorder %s19, 0
      %p136 = por %p134, %p135
      %s137 = ssub.s32 %s20, %s32
      %s138 = ssub.s32 %s21, %s28
      %s139 = sor.u32 %s137, %s138
      %p140 = scmp.eq.s32.totalorder %s139, 0
      %s142 = sadd.s32 %s141, 1
      %s143 = scalar_select %p140, %s141, %s142
      %p146 = pneg %p140
      %p147 = scmp.eq.s32.totalorder %s13, 1
      %p148 = por %p146, %p147
      %p149 = scmp.ne.s32.totalorder %s141, %s144
      %p150 = scmp.eq.s32.totalorder %s13, 0
      %p151 = por %p149, %p150
      %p152 = scmp.ne.s32.totalorder %s141, %s144
      %p153 = scmp.eq.s32.totalorder %s18, 1
      %p154 = por %p152, %p153
      %p155 = scmp.ne.s32.totalorder %s144, %s145
      %p156 = scmp.eq.s32.totalorder %s18, 0
      %p157 = por %p155, %p156
      %p158 = scmp.ne.s32.totalorder %s144, %s145
      %p159 = scmp.eq.s32.totalorder %s19, 1
      %p160 = por %p158, %p159
      %p162 = scmp.ne.s32.totalorder %s145, %s161
      %p163 = scmp.eq.s32.totalorder %s19, 0
      %p164 = por %p162, %p163
      %p165 = scmp.le.s32.totalorder 1, %s13
      %p166 = scmp.lt.s32.totalorder %s13, 3
      %p167 = pnand %p165, %p166
      %p168 = pneg %p167
      // Predicated region
      $region9: #{tpu_custom_call.1} parent=5 // pred_check
        _
      $region10: #{tpu_custom_call.1} parent=5 // pred_check_branch
        %170 = sbr.rel (%p167) target = $region12
      $region11: #{tpu_custom_call.1} parent=5 // pred_region
        %s171 = ssub.s32 %s13, 1
        // Predicated region
        $region13: #{tpu_custom_call.1} parent=11 // pred_check
          %p172 = pneg %p77
        $region14: #{tpu_custom_call.1} parent=11 // pred_check_branch
          %174 = sbr.rel (%p172) target = $region16
        $region15: #{tpu_custom_call.1} parent=11 // pred_region
          %p175 = scmp.lt.s32.totalorder %s23, 0
          %s176 = scalar_select %p175, %s23, 0
          %s177 = smul.addr %s176, 8
          %s178 = scalar_lea.vmem %s1, %s177
        $region16: #{tpu_custom_call.1} parent=11 // pred_fallthru
          _
        // Predicated region
        $region17: #{tpu_custom_call.1} parent=11 // pred_check
          %p179 = pneg %p103
        $region18: #{tpu_custom_call.1} parent=11 // pred_check_branch
          %181 = sbr.rel (%p179) target = $region20
        $region19: #{tpu_custom_call.1} parent=11 // pred_region
          %p182 = scmp.lt.s32.totalorder %s23, 0
          %s183 = scalar_select %p182, %s23, 0
          %s184 = scalar_lea.vmem %s2, %s183
        $region20: #{tpu_custom_call.1} parent=11 // pred_fallthru
          _
        // Predicated region
        $region21: #{tpu_custom_call.1} parent=11 // pred_check
          %p185 = pneg %p129
        $region22: #{tpu_custom_call.1} parent=11 // pred_check_branch
          %187 = sbr.rel (%p185) target = $region24
        $region23: #{tpu_custom_call.1} parent=11 // pred_region
          %p188 = scmp.lt.s32.totalorder %s23, 0
          %s189 = scalar_select %p188, %s23, 0
          %s190 = scalar_lea.vmem %s3, %s189
        $region24: #{tpu_custom_call.1} parent=11 // pred_fallthru
          _
      $region12: #{tpu_custom_call.1} parent=5 // pred_fallthru
        _
      %p191 = scmp.lt.s32.totalorder %s13, 2
      // Predicated region
      $region25: #{tpu_custom_call.1} parent=5 // pred_check
        %p192 = pneg %p191
      $region26: #{tpu_custom_call.1} parent=5 // pred_check_branch
        %194 = sbr.rel (%p192) target = $region28
      $region27: #{tpu_custom_call.1} parent=5 // pred_region
        // Predicated region
        $region29: #{tpu_custom_call.1} parent=27 // pred_check
          %p195 = pneg %p45
        $region30: #{tpu_custom_call.1} parent=27 // pred_check_branch
          %197 = sbr.rel (%p195) target = $region32
        $region31: #{tpu_custom_call.1} parent=27 // pred_region
          %s198 = smul.u32 32, %s20
          %p199 = scmp.lt.s32.totalorder %s198, 63
          %s200 = scalar_select %p199, %s198, 63
          %s201 = smul.addr %s200, 8
          %s202 = scalar_lea.vmem %s0, %s201
          %s203 = smul.u32 32, %s20
        $region32: #{tpu_custom_call.1} parent=27 // pred_fallthru
          _
      $region28: #{tpu_custom_call.1} parent=5 // pred_fallthru
        _
      %p204 = scmp.le.s32.totalorder 1, %s13
      %p205 = scmp.lt.s32.totalorder %s13, 3
      %p206 = pnand %p204, %p205
      %p207 = pneg %p206
      // Predicated region
      $region33: #{tpu_custom_call.1} parent=5 // pred_check
        _
      $region34: #{tpu_custom_call.1} parent=5 // pred_check_branch
        %209 = sbr.rel (%p206) target = $region36
      $region35: #{tpu_custom_call.1} parent=5 // pred_region
        %s210 = ssub.s32 %s13, 1
        %s211 = smul.u32 32, %s22
        %p212 = scmp.lt.s32.totalorder %s211, 63
        %s213 = scalar_select %p212, %s211, 63
        %s214 = smul.addr %s213, 8
        %s215 = scalar_lea.vmem %s0, %s214
        %p216 = pneg %p51
        %p217 = pneg %p48
        %p218 = scmp.lt.s32.totalorder %s23, 0
        %s219 = scalar_select %p218, %s23, 0
        %s220 = smul.addr %s219, 8
        %s221 = scalar_lea.vmem %s1, %s220
        %p222 = pneg %p77
        %p223 = pneg %p74
        %p224 = scmp.lt.s32.totalorder %s23, 0
        %s225 = scalar_select %p224, %s23, 0
        %s226 = scalar_lea.vmem %s2, %s225
        %p227 = pneg %p103
        %p228 = pneg %p100
        %p229 = scmp.lt.s32.totalorder %s23, 0
        %s230 = scalar_select %p229, %s23, 0
        %s231 = scalar_lea.vmem %s3, %s230
        %p232 = pneg %p129
        %p233 = pneg %p126
        %p234 = pneg %p157
        %p235 = pneg %p154
        %s236 = sand.u32 %s144, 1
        %s237 = scalar_lea.sflag [#allocation3], %s236
        %s238 = sand.u32 %s144, 1
        %s239 = smul.addr %s238, 256
        %s240 = scalar_lea.vmem [#allocation2], %s239
        %s241 = smul.u32 32, %s22
        %p242 = scmp.lt.s32.totalorder %s241, 63
        %s243 = scalar_select %p242, %s241, 63
        %s244 = smul.addr %s243, 8
        %s245 = scalar_lea.vmem %s0, %s244
        %s246 = smul.u32 32, %s22
        %p247 = scmp.lt.s32.totalorder %s23, 0
        %s248 = scalar_select %p247, %s23, 0
        %s249 = smul.addr %s248, 8
        %s250 = scalar_lea.vmem %s1, %s249
        %p251 = scmp.lt.s32.totalorder %s23, 0
        %s252 = scalar_select %p251, %s23, 0
        %s253 = scalar_lea.vmem %s2, %s252
        %p254 = scmp.lt.s32.totalorder %s23, 0
        %s255 = scalar_select %p254, %s23, 0
        %s256 = scalar_lea.vmem %s3, %s255
        %s257 = smul.u32 32, %s22
        %v258 = vld [vmem:[%s245] sm:$0xff]
        %v259 = vld [vmem:[%s245 + $0x8] sm:$0xff]
        %v260 = vld [vmem:[%s245 + $0x10] sm:$0xff]
        %v261 = vld [vmem:[%s245 + $0x18] sm:$0xff]
        %v262 = vld [vmem:[%s245 + $0x20] sm:$0xff]
        %v263 = vld [vmem:[%s245 + $0x28] sm:$0xff]
        %v264 = vld [vmem:[%s245 + $0x30] sm:$0xff]
        %v265 = vld [vmem:[%s245 + $0x38] sm:$0xff]
        %v266 = vld [vmem:[%s245 + $0x40] sm:$0xff]
        %v267 = vld [vmem:[%s245 + $0x48] sm:$0xff]
        %v268 = vld [vmem:[%s245 + $0x50] sm:$0xff]
        %v269 = vld [vmem:[%s245 + $0x58] sm:$0xff]
        %v270 = vld [vmem:[%s245 + $0x60] sm:$0xff]
        %v271 = vld [vmem:[%s245 + $0x68] sm:$0xff]
        %v272 = vld [vmem:[%s245 + $0x70] sm:$0xff]
        %v273 = vld [vmem:[%s245 + $0x78] sm:$0xff]
        %v274 = vld [vmem:[%s245 + $0x80] sm:$0xff]
        %v275 = vld [vmem:[%s245 + $0x88] sm:$0xff]
        %v276 = vld [vmem:[%s245 + $0x90] sm:$0xff]
        %v277 = vld [vmem:[%s245 + $0x98] sm:$0xff]
        %v278 = vld [vmem:[%s245 + $0xa0] sm:$0xff]
        %v279 = vld [vmem:[%s245 + $0xa8] sm:$0xff]
        %v280 = vld [vmem:[%s245 + $0xb0] sm:$0xff]
        %v281 = vld [vmem:[%s245 + $0xb8] sm:$0xff]
        %v282 = vld [vmem:[%s245 + $0xc0] sm:$0xff]
        %v283 = vld [vmem:[%s245 + $0xc8] sm:$0xff]
        %v284 = vld [vmem:[%s245 + $0xd0] sm:$0xff]
        %v285 = vld [vmem:[%s245 + $0xd8] sm:$0xff]
        %v286 = vld [vmem:[%s245 + $0xe0] sm:$0xff]
        %v287 = vld [vmem:[%s245 + $0xe8] sm:$0xff]
        %v288 = vld [vmem:[%s245 + $0xf0] sm:$0xff]
        %v289 = vld [vmem:[%s245 + $0xf8] sm:$0xff]
        %v290 = vld [vmem:[%s250] sm:$0xff]
        %v291 = vld [vmem:[%s250 + $0x8] sm:$0xff]
        %v292 = vld [vmem:[%s250 + $0x10] sm:$0xff]
        %v293 = vld [vmem:[%s250 + $0x18] sm:$0xff]
        %v294 = vld [vmem:[%s250 + $0x20] sm:$0xf]
        %vm295 = vcmask 293888
        %v297 = vsel %vm295, %v258, 0
        %v300 = vsel %vm295, %v259, 0
        %v303 = vsel %vm295, %v260, 0
        %v306 = vsel %vm295, %v261, 0
        %v309 = vsel %vm295, %v262, 0
        %v312 = vsel %vm295, %v263, 0
        %v315 = vsel %vm295, %v264, 0
        %v318 = vsel %vm295, %v265, 0
        %v321 = vsel %vm295, %v266, 0
        %v324 = vsel %vm295, %v267, 0
        %v327 = vsel %vm295, %v268, 0
        %v330 = vsel %vm295, %v269, 0
        %v333 = vsel %vm295, %v270, 0
        %v336 = vsel %vm295, %v271, 0
        %v339 = vsel %vm295, %v272, 0
        %v342 = vsel %vm295, %v273, 0
        %v345 = vsel %vm295, %v274, 0
        %v348 = vsel %vm295, %v275, 0
        %v351 = vsel %vm295, %v276, 0
        %v354 = vsel %vm295, %v277, 0
        %v357 = vsel %vm295, %v278, 0
        %v360 = vsel %vm295, %v279, 0
        %v363 = vsel %vm295, %v280, 0
        %v366 = vsel %vm295, %v281, 0
        %v369 = vsel %vm295, %v282, 0
        %v372 = vsel %vm295, %v283, 0
        %v375 = vsel %vm295, %v284, 0
        %v378 = vsel %vm295, %v285, 0
        %v381 = vsel %vm295, %v286, 0
        %v384 = vsel %vm295, %v287, 0
        %v387 = vsel %vm295, %v288, 0
        %v390 = vsel %vm295, %v289, 0
        %vm392 = vcmask 1043456
        %v394 = vsel %vm392, %v294, 0
        %396 = vmatpush.msra.mxu0 0.0
        %397 = vmatpush.msra.mxu0 0.0
        %398 = vmatpush.msra.mxu0 0.0
        %399 = vmatpush.msra.mxu0 0.0
        %400 = vmatpush.msra.mxu0 0.0
        %401 = vmatpush.msra.mxu0 0.0
        %402 = vmatpush.msra.mxu0 0.0
        %403 = vmatpush.msra.mxu0 0.0
        %404 = vmatpush.msra.mxu0 0.0
        %405 = vmatpush.msra.mxu0 0.0
        %406 = vmatpush.msra.mxu0 0.0
        %407 = vmatpush.msra.mxu0 %v394
        %408 = vmatpush.msra.mxu0 %v293
        %409 = vmatpush.msra.mxu0 %v292
        %410 = vmatpush.msra.mxu0 %v291
        %411 = vmatpush.msra.mxu0 %v290
        %412 = vmatmul.f32.gmra.mxu0 %v297
        %v413 = vpop.f32.mrf.mxu0
        %v414 = vadd.f32 0.0, %v413
        %415 = vmatmul.f32.gmra.mxu0 %v300
        %v416 = vpop.f32.mrf.mxu0
        %v417 = vadd.f32 0.0, %v416
        %418 = vmatmul.f32.gmra.mxu0 %v303
        %v419 = vpop.f32.mrf.mxu0
        %v420 = vadd.f32 0.0, %v419
        %421 = vmatmul.f32.gmra.mxu0 %v306
        %v422 = vpop.f32.mrf.mxu0
        %v423 = vadd.f32 0.0, %v422
        %424 = vmatmul.f32.gmra.mxu0 %v309
        %v425 = vpop.f32.mrf.mxu0
        %v426 = vadd.f32 0.0, %v425
        %427 = vmatmul.f32.gmra.mxu0 %v312
        %v428 = vpop.f32.mrf.mxu0
        %v429 = vadd.f32 0.0, %v428
        %430 = vmatmul.f32.gmra.mxu0 %v315
        %v431 = vpop.f32.mrf.mxu0
        %v432 = vadd.f32 0.0, %v431
        %433 = vmatmul.f32.gmra.mxu0 %v318
        %v434 = vpop.f32.mrf.mxu0
        %v435 = vadd.f32 0.0, %v434
        %436 = vmatmul.f32.gmra.mxu0 %v321
        %v437 = vpop.f32.mrf.mxu0
        %v438 = vadd.f32 0.0, %v437
        %439 = vmatmul.f32.gmra.mxu0 %v324
        %v440 = vpop.f32.mrf.mxu0
        %v441 = vadd.f32 0.0, %v440
        %442 = vmatmul.f32.gmra.mxu0 %v327
        %v443 = vpop.f32.mrf.mxu0
        %v444 = vadd.f32 0.0, %v443
        %445 = vmatmul.f32.gmra.mxu0 %v330
        %v446 = vpop.f32.mrf.mxu0
        %v447 = vadd.f32 0.0, %v446
        %448 = vmatmul.f32.gmra.mxu0 %v333
        %v449 = vpop.f32.mrf.mxu0
        %v450 = vadd.f32 0.0, %v449
        %451 = vmatmul.f32.gmra.mxu0 %v336
        %v452 = vpop.f32.mrf.mxu0
        %v453 = vadd.f32 0.0, %v452
        %454 = vmatmul.f32.gmra.mxu0 %v339
        %v455 = vpop.f32.mrf.mxu0
        %v456 = vadd.f32 0.0, %v455
        %457 = vmatmul.f32.gmra.mxu0 %v342
        %v458 = vpop.f32.mrf.mxu0
        %v459 = vadd.f32 0.0, %v458
        %460 = vmatmul.f32.gmra.mxu0 %v345
        %v461 = vpop.f32.mrf.mxu0
        %v462 = vadd.f32 0.0, %v461
        %463 = vmatmul.f32.gmra.mxu0 %v348
        %v464 = vpop.f32.mrf.mxu0
        %v465 = vadd.f32 0.0, %v464
        %466 = vmatmul.f32.gmra.mxu0 %v351
        %v467 = vpop.f32.mrf.mxu0
        %v468 = vadd.f32 0.0, %v467
        %469 = vmatmul.f32.gmra.mxu0 %v354
        %v470 = vpop.f32.mrf.mxu0
        %v471 = vadd.f32 0.0, %v470
        %472 = vmatmul.f32.gmra.mxu0 %v357
        %v473 = vpop.f32.mrf.mxu0
        %v474 = vadd.f32 0.0, %v473
        %475 = vmatmul.f32.gmra.mxu0 %v360
        %v476 = vpop.f32.mrf.mxu0
        %v477 = vadd.f32 0.0, %v476
        %478 = vmatmul.f32.gmra.mxu0 %v363
        %v479 = vpop.f32.mrf.mxu0
        %v480 = vadd.f32 0.0, %v479
        %481 = vmatmul.f32.gmra.mxu0 %v366
        %v482 = vpop.f32.mrf.mxu0
        %v483 = vadd.f32 0.0, %v482
        %484 = vmatmul.f32.gmra.mxu0 %v369
        %v485 = vpop.f32.mrf.mxu0
        %v486 = vadd.f32 0.0, %v485
        %487 = vmatmul.f32.gmra.mxu0 %v372
        %v488 = vpop.f32.mrf.mxu0
        %v489 = vadd.f32 0.0, %v488
        %490 = vmatmul.f32.gmra.mxu0 %v375
        %v491 = vpop.f32.mrf.mxu0
        %v492 = vadd.f32 0.0, %v491
        %493 = vmatmul.f32.gmra.mxu0 %v378
        %v494 = vpop.f32.mrf.mxu0
        %v495 = vadd.f32 0.0, %v494
        %496 = vmatmul.f32.gmra.mxu0 %v381
        %v497 = vpop.f32.mrf.mxu0
        %v498 = vadd.f32 0.0, %v497
        %499 = vmatmul.f32.gmra.mxu0 %v384
        %v500 = vpop.f32.mrf.mxu0
        %v501 = vadd.f32 0.0, %v500
        %502 = vmatmul.f32.gmra.mxu0 %v387
        %v503 = vpop.f32.mrf.mxu0
        %v504 = vadd.f32 0.0, %v503
        %505 = vmatmul.f32.gmra.mxu0 %v390
        %v506 = vpop.f32.mrf.mxu0
        %v507 = vadd.f32 0.0, %v506
        %508 = vdwg.mxu0
        %v509 = vld [vmem:[%s253] sm:$0x1]
        %v511 = vperm.slane %v509, 0
        %v513 = vmul.f32 %v414, %v511
        %v514 = vmul.f32 %v417, %v511
        %v515 = vmul.f32 %v420, %v511
        %v516 = vmul.f32 %v423, %v511
        %v517 = vmul.f32 %v426, %v511
        %v518 = vmul.f32 %v429, %v511
        %v519 = vmul.f32 %v432, %v511
        %v520 = vmul.f32 %v435, %v511
        %v521 = vmul.f32 %v438, %v511
        %v522 = vmul.f32 %v441, %v511
        %v523 = vmul.f32 %v444, %v511
        %v524 = vmul.f32 %v447, %v511
        %v525 = vmul.f32 %v450, %v511
        %v526 = vmul.f32 %v453, %v511
        %v527 = vmul.f32 %v456, %v511
        %v528 = vmul.f32 %v459, %v511
        %v529 = vmul.f32 %v462, %v511
        %v530 = vmul.f32 %v465, %v511
        %v531 = vmul.f32 %v468, %v511
        %v532 = vmul.f32 %v471, %v511
        %v533 = vmul.f32 %v474, %v511
        %v534 = vmul.f32 %v477, %v511
        %v535 = vmul.f32 %v480, %v511
        %v536 = vmul.f32 %v483, %v511
        %v537 = vmul.f32 %v486, %v511
        %v538 = vmul.f32 %v489, %v511
        %v539 = vmul.f32 %v492, %v511
        %v540 = vmul.f32 %v495, %v511
        %v541 = vmul.f32 %v498, %v511
        %v542 = vmul.f32 %v501, %v511
        %v543 = vmul.f32 %v504, %v511
        %v544 = vmul.f32 %v507, %v511
        %v545 = vld [vmem:[%s256] sm:$0x1]
        %v547 = vperm.slane %v545, 0
        %v549 = vadd.f32 %v513, %v547
        %v550 = vadd.f32 %v514, %v547
        %v551 = vadd.f32 %v515, %v547
        %v552 = vadd.f32 %v516, %v547
        %v553 = vadd.f32 %v517, %v547
        %v554 = vadd.f32 %v518, %v547
        %v555 = vadd.f32 %v519, %v547
        %v556 = vadd.f32 %v520, %v547
        %v557 = vadd.f32 %v521, %v547
        %v558 = vadd.f32 %v522, %v547
        %v559 = vadd.f32 %v523, %v547
        %v560 = vadd.f32 %v524, %v547
        %v561 = vadd.f32 %v525, %v547
        %v562 = vadd.f32 %v526, %v547
        %v563 = vadd.f32 %v527, %v547
        %v564 = vadd.f32 %v528, %v547
        %v565 = vadd.f32 %v529, %v547
        %v566 = vadd.f32 %v530, %v547
        %v567 = vadd.f32 %v531, %v547
        %v568 = vadd.f32 %v532, %v547
        %v569 = vadd.f32 %v533, %v547
        %v570 = vadd.f32 %v534, %v547
        %v571 = vadd.f32 %v535, %v547
        %v572 = vadd.f32 %v536, %v547
        %v573 = vadd.f32 %v537, %v547
        %v574 = vadd.f32 %v538, %v547
        %v575 = vadd.f32 %v539, %v547
        %v576 = vadd.f32 %v540, %v547
        %v577 = vadd.f32 %v541, %v547
        %v578 = vadd.f32 %v542, %v547
        %v579 = vadd.f32 %v543, %v547
        %v580 = vadd.f32 %v544, %v547
        %v581 = vmax.f32 %v549, 0.0
        %v582 = vmax.f32 %v550, 0.0
        %v583 = vmax.f32 %v551, 0.0
        %v584 = vmax.f32 %v552, 0.0
        %v585 = vmax.f32 %v553, 0.0
        %v586 = vmax.f32 %v554, 0.0
        %v587 = vmax.f32 %v555, 0.0
        %v588 = vmax.f32 %v556, 0.0
        %v589 = vmax.f32 %v557, 0.0
        %v590 = vmax.f32 %v558, 0.0
        %v591 = vmax.f32 %v559, 0.0
        %v592 = vmax.f32 %v560, 0.0
        %v593 = vmax.f32 %v561, 0.0
        %v594 = vmax.f32 %v562, 0.0
        %v595 = vmax.f32 %v563, 0.0
        %v596 = vmax.f32 %v564, 0.0
        %v597 = vmax.f32 %v565, 0.0
        %v598 = vmax.f32 %v566, 0.0
        %v599 = vmax.f32 %v567, 0.0
        %v600 = vmax.f32 %v568, 0.0
        %v601 = vmax.f32 %v569, 0.0
        %v602 = vmax.f32 %v570, 0.0
        %v603 = vmax.f32 %v571, 0.0
        %v604 = vmax.f32 %v572, 0.0
        %v605 = vmax.f32 %v573, 0.0
        %v606 = vmax.f32 %v574, 0.0
        %v607 = vmax.f32 %v575, 0.0
        %v608 = vmax.f32 %v576, 0.0
        %v609 = vmax.f32 %v577, 0.0
        %v610 = vmax.f32 %v578, 0.0
        %v611 = vmax.f32 %v579, 0.0
        %v612 = vmax.f32 %v580, 0.0
        %613 = vst [vmem:[%s240] sm:$0xff] %v581
        %614 = vst [vmem:[%s240 + $0x8] sm:$0xff] %v582
        %615 = vst [vmem:[%s240 + $0x10] sm:$0xff] %v583
        %616 = vst [vmem:[%s240 + $0x18] sm:$0xff] %v584
        %617 = vst [vmem:[%s240 + $0x20] sm:$0xff] %v585
        %618 = vst [vmem:[%s240 + $0x28] sm:$0xff] %v586
        %619 = vst [vmem:[%s240 + $0x30] sm:$0xff] %v587
        %620 = vst [vmem:[%s240 + $0x38] sm:$0xff] %v588
        %621 = vst [vmem:[%s240 + $0x40] sm:$0xff] %v589
        %622 = vst [vmem:[%s240 + $0x48] sm:$0xff] %v590
        %623 = vst [vmem:[%s240 + $0x50] sm:$0xff] %v591
        %624 = vst [vmem:[%s240 + $0x58] sm:$0xff] %v592
        %625 = vst [vmem:[%s240 + $0x60] sm:$0xff] %v593
        %626 = vst [vmem:[%s240 + $0x68] sm:$0xff] %v594
        %627 = vst [vmem:[%s240 + $0x70] sm:$0xff] %v595
        %628 = vst [vmem:[%s240 + $0x78] sm:$0xff] %v596
        %629 = vst [vmem:[%s240 + $0x80] sm:$0xff] %v597
        %630 = vst [vmem:[%s240 + $0x88] sm:$0xff] %v598
        %631 = vst [vmem:[%s240 + $0x90] sm:$0xff] %v599
        %632 = vst [vmem:[%s240 + $0x98] sm:$0xff] %v600
        %633 = vst [vmem:[%s240 + $0xa0] sm:$0xff] %v601
        %634 = vst [vmem:[%s240 + $0xa8] sm:$0xff] %v602
        %635 = vst [vmem:[%s240 + $0xb0] sm:$0xff] %v603
        %636 = vst [vmem:[%s240 + $0xb8] sm:$0xff] %v604
        %637 = vst [vmem:[%s240 + $0xc0] sm:$0xff] %v605
        %638 = vst [vmem:[%s240 + $0xc8] sm:$0xff] %v606
        %639 = vst [vmem:[%s240 + $0xd0] sm:$0xff] %v607
        %640 = vst [vmem:[%s240 + $0xd8] sm:$0xff] %v608
        %641 = vst [vmem:[%s240 + $0xe0] sm:$0xff] %v609
        %642 = vst [vmem:[%s240 + $0xe8] sm:$0xff] %v610
        %643 = vst [vmem:[%s240 + $0xf0] sm:$0xff] %v611
        %644 = vst [vmem:[%s240 + $0xf8] sm:$0xff] %v612
        %s645 = sand.u32 %s144, 1
        %s646 = scalar_lea.sflag [#allocation3], %s645
        %s647 = sand.u32 %s144, 1
        %s648 = smul.addr %s647, 256
        %s649 = scalar_lea.vmem [#allocation2], %s648
        // Predicated region
        $region37: #{tpu_custom_call.1} parent=35 // pred_check
          %p650 = pneg %p154
        $region38: #{tpu_custom_call.1} parent=35 // pred_check_branch
          %652 = sbr.rel (%p650) target = $region40
        $region39: #{tpu_custom_call.1} parent=35 // pred_region
          %s653 = smul.u32 32, %s22
          %655 = vsyncadd %s646, 0
          %s656 = sadd.s32 %s23, %s653
          %s657 = smul.addr %s656, 8
          %s658 = scalar_lea.hbm %s4, %s657
          %s659 = sshll.u32 %s649, 4
          %s660 = int_to_ptr.vmem [resolvable:$true] %s659
          %s661 = sshll.u32 %s658, 4
          %s662 = int_to_ptr.hbm [resolvable:$true] %s661
          %667 = dma.vmem_to_hbm [thread:$0]  %s660, 4096, %s662, %s646, 128, 128, 8
        $region40: #{tpu_custom_call.1} parent=35 // pred_fallthru
          _
      $region36: #{tpu_custom_call.1} parent=5 // pred_fallthru
        _
      %p668 = scmp.le.s32.totalorder 2, %s13
      // Predicated region
      $region41: #{tpu_custom_call.1} parent=5 // pred_check
        %p669 = pneg %p668
      $region42: #{tpu_custom_call.1} parent=5 // pred_check_branch
        %671 = sbr.rel (%p669) target = $region44
      $region43: #{tpu_custom_call.1} parent=5 // pred_region
        %s672 = ssub.s32 %s13, 2
        // Predicated region
        $region45: #{tpu_custom_call.1} parent=43 // pred_check
          %p673 = pneg %p160
        $region46: #{tpu_custom_call.1} parent=43 // pred_check_branch
          %675 = sbr.rel (%p673) target = $region48
        $region47: #{tpu_custom_call.1} parent=43 // pred_region
          %s676 = sand.u32 %s145, 1
          %s677 = scalar_lea.sflag [#allocation3], %s676
          %s678 = sand.u32 %s145, 1
          %s679 = smul.addr %s678, 256
          %s680 = scalar_lea.vmem [#allocation2], %s679
          %682 = dma.done %s677, 4096
        $region48: #{tpu_custom_call.1} parent=43 // pred_fallthru
          _
      $region44: #{tpu_custom_call.1} parent=5 // pred_fallthru
        _
    $region6: #{tpu_custom_call.1} parent=1 // loop_footer
      %s17 = sadd.s32 1, %s13
    $region7: #{tpu_custom_call.1} parent=1 // loop_footer_branch
      %12 = sbr.rel target = $region3
    $region8: #{tpu_custom_call.1} parent=1 // loop_exit
      _
    %683 = vsyncpa [#allocation3], 1
    %s684 = scalar_lea.sflag [#allocation3], 1
    %685 = vsyncpa %s684, 1

</llo_original>
